<compile_context>
chip_gen: v7x
topology: tpu7x:2x2x1
jax: 0.10.0
libtpu: 0.0.40
codegen_flags: <defaults>
</compile_context>

<pallas_src>
import functools

import jax
import jax.numpy as jnp
from jax import lax
from jax.experimental import pallas as pl
from jax.experimental.pallas import tpu as pltpu

_R_PAD = 128  # LoRA rank padded up to one full lane width


# ---------------------------------------------------------------------------
# Kernel
# ---------------------------------------------------------------------------
def _lora_linear_kernel(x_ref, w_ref, xa_ref, b_ref, bias_ref, o_ref, acc_ref):
    """Fused y = x @ W^T + xa @ B_scaled^T + bias over a 3-D (i, j, k) grid.

    Per-grid-step shapes:
      x_ref    : [tm, tk]        activations
      w_ref    : [tn, tk]        W in native nn.Linear layout (d_out, d_in)
      xa_ref   : [tm, r_pad]     precomputed x @ A^T (zero-padded rank)
      b_ref    : [tn, r_pad]     B in native layout, (alpha/r) scale folded in
      bias_ref : [1, tn]
      o_ref    : [tm, tn]
      acc_ref  : f32 [tm, tn]    VMEM scratch (base accumulator)
    """
    k = pl.program_id(2)

    @pl.when(k == 0)
    def _init():
        acc_ref[...] = jnp.zeros_like(acc_ref)

    # Base projection partial product: contract both operands on their last
    # dim ([tm, tk] . [tn, tk] -> [tm, tn]); W needs no wrapper transpose.
    acc_ref[...] += lax.dot_general(
        x_ref[...], w_ref[...],
        dimension_numbers=(((1,), (1,)), ((), ())),
        preferred_element_type=jnp.float32)

    @pl.when(k == pl.num_programs(2) - 1)
    def _epilogue():
        # LoRA up-projection: [tm, r_pad] . [tn, r_pad] -> [tm, tn].
        # Native-dtype MXU dot with f32 accumulation (no per-tile upcast).
        delta = lax.dot_general(
            xa_ref[...], b_ref[...],
            dimension_numbers=(((1,), (1,)), ((), ())),
            preferred_element_type=jnp.float32)
        out = acc_ref[...] + delta + bias_ref[...].astype(jnp.float32)
        o_ref[...] = out.astype(o_ref.dtype)


# ---------------------------------------------------------------------------
# Wrapper
# ---------------------------------------------------------------------------
def _pick_tile(dim: int, pref: int, multiple: int) -> int:
    """Largest tile <= pref that divides dim and is a multiple of `multiple`;
    falls back to the full extent (always legal as a BlockSpec dim)."""
    t = min(pref, dim)
    t = (t // multiple) * multiple
    while t >= multiple:
        if dim % t == 0:
            return t
        t -= multiple
    return dim


def _default_tiles():
    """Per-generation (tm, tn, tk) defaults from the bandwidth roofline."""
    try:
        kind = jax.devices()[0].device_kind.lower()
    except Exception:  # pragma: no cover - e.g. no devices during tracing
        kind = ""
    if "v6" in kind:          # 128 MiB VMEM, needs ~650 flop/byte -> big tm
        return 1024, 512, 1024
    if "v5" in kind:          # ~240 flop/byte roofline, 128 MiB VMEM
        return 512, 512, 1024
    # v7x (64 MiB VMEM, ~310 flop/byte) and anything unknown: conservative.
    return 512, 512, 1024


@functools.partial(jax.jit, static_argnames=("lora_alpha", "tm", "tn", "tk"))
def _lora_linear_impl(x, weight, bias, lora_a, lora_b, *,
                      lora_alpha: int, tm: int, tn: int, tk: int):
    B, S, d_in = x.shape
    d_out = weight.shape[0]
    r = lora_a.shape[0]
    scale = float(lora_alpha) / float(r)

    # Flatten (batch, seq) -> M rows; output last dim stays lane-dense.
    M = B * S
    x2 = x.reshape(M, d_in)

    # Precompute the rank-r down-projection once with plain XLA (tiny:
    # M x d_in x r flops) and zero-pad the rank up to a full 128-lane tile.
    xa = lax.dot_general(x2, lora_a,
                         dimension_numbers=(((1,), (1,)), ((), ())),
                         preferred_element_type=jnp.float32)
    xa = jnp.pad(xa.astype(x.dtype), ((0, 0), (0, _R_PAD - r)))      # [M, r_pad]

    # B in native [d_out, r] layout, scale folded in, rank zero-padded.
    b_p = jnp.pad((lora_b * scale).astype(weight.dtype),
                  ((0, 0), (0, _R_PAD - r)))                         # [d_out, r_pad]
    bias2 = bias.reshape(1, d_out)

    # Tile sizes: prefer big MXU-friendly tiles, clamp to the actual dims.
    tm = _pick_tile(M, tm, 8)
    tn = _pick_tile(d_out, tn, 128)
    tk = _pick_tile(d_in, tk, 128)
    grid = (M // tm, d_out // tn, d_in // tk)   # K reduction is the LAST axis

    # Right-size the VMEM request: ~2x the actual double-buffered working set.
    in_b = jnp.dtype(x.dtype).itemsize
    w_b = jnp.dtype(weight.dtype).itemsize
    working = (2 * (tm * tk * in_b           # x blocks (double buffered)
                    + tn * tk * w_b          # W blocks
                    + tm * _R_PAD * in_b     # xa blocks
                    + tn * _R_PAD * w_b      # B blocks
                    + tn * jnp.dtype(bias.dtype).itemsize
                    + tm * tn * in_b)        # output blocks
               + tm * tn * 4)                # f32 accumulator scratch
    vmem_limit = int(min(max(2 * working, 32 << 20), 56 << 20))

    out2 = pl.pallas_call(
        _lora_linear_kernel,
        out_shape=jax.ShapeDtypeStruct((M, d_out), x.dtype),
        grid_spec=pltpu.PrefetchScalarGridSpec(
            num_scalar_prefetch=0,
            grid=grid,
            in_specs=[
                pl.BlockSpec((tm, tk), lambda i, j, k: (i, k)),        # x
                pl.BlockSpec((tn, tk), lambda i, j, k: (j, k)),        # W (native)
                pl.BlockSpec((tm, _R_PAD), lambda i, j, k: (i, 0)),    # x @ A^T
                pl.BlockSpec((tn, _R_PAD), lambda i, j, k: (j, 0)),    # B (scaled)
                pl.BlockSpec((1, tn), lambda i, j, k: (0, j)),         # bias
            ],
            out_specs=pl.BlockSpec((tm, tn), lambda i, j, k: (i, j)),
            scratch_shapes=[
                pltpu.VMEM((tm, tn), jnp.float32),   # base accumulator
            ],
        ),
        compiler_params=pltpu.CompilerParams(
            dimension_semantics=("parallel", "parallel", "arbitrary"),
            vmem_limit_bytes=vmem_limit,
        ),
    )(x2, weight, xa, b_p, bias2)

    return out2.reshape(B, S, d_out)


def lora_linear(x, weight, bias, lora_a, lora_b, *,
                lora_alpha: int, tm=None, tn=None, tk=None):
    """y = x @ W^T + (alpha/r) * (x @ A^T) @ B^T + bias  (one Pallas kernel).

    x      : [batch, seq, d_in]
    weight : [d_out, d_in]   (PyTorch nn.Linear layout, consumed natively)
    bias   : [d_out]
    lora_a : [r, d_in]
    lora_b : [d_out, r]
    """
    dtm, dtn, dtk = _default_tiles()
    return _lora_linear_impl(x, weight, bias, lora_a, lora_b,
                             lora_alpha=lora_alpha,
                             tm=tm or dtm, tn=tn or dtn, tk=tk or dtk)


# Pure-JAX reference for correctness checking.
def lora_linear_ref(x, weight, bias, lora_a, lora_b, lora_alpha):
    r = lora_a.shape[0]
    scale = lora_alpha / r
    base = jnp.einsum("bsd,od->bso", x, weight) + bias
    down = jnp.einsum("bsd,rd->bsr", x, lora_a)
    delta = jnp.einsum("bsr,or->bso", down, lora_b) * scale
    return base + delta


# ---------------------------------------------------------------------------
# Demo / self-test
# ---------------------------------------------------------------------------
if __name__ == "__main__":
    # Small but tile-aligned shapes implied by the module: a transformer
    # block's query/value projections with LoRA (target_modules=['query','value']).
    batch, seq, hidden = 2, 64, 128
    lora_r, lora_alpha = 8, 16

    key = jax.random.PRNGKey(0)
    ks = jax.random.split(key, 9)
    x = jax.random.normal(ks[0], (batch, seq, hidden), jnp.float32)

    # query projection params
    wq = jax.random.normal(ks[1], (hidden, hidden), jnp.float32) * 0.05
    bq = jax.random.normal(ks[2], (hidden,), jnp.float32) * 0.05
    aq = jax.random.normal(ks[3], (lora_r, hidden), jnp.float32) * 0.05
    bq_lo = jax.random.normal(ks[4], (hidden, lora_r), jnp.float32) * 0.05

    # value projection params
    wv = jax.random.normal(ks[5], (hidden, hidden), jnp.float32) * 0.05
    bv = jax.random.normal(ks[6], (hidden,), jnp.float32) * 0.05
    av = jax.random.normal(ks[7], (lora_r, hidden), jnp.float32) * 0.05
    bv_lo = jax.random.normal(ks[8], (hidden, lora_r), jnp.float32) * 0.05

    q = lora_linear(x, wq, bq, aq, bq_lo, lora_alpha=lora_alpha)
    v = lora_linear(x, wv, bv, av, bv_lo, lora_alpha=lora_alpha)
    q, v = jax.block_until_ready((q, v))

    q_ref = lora_linear_ref(x, wq, bq, aq, bq_lo, lora_alpha)
    v_ref = lora_linear_ref(x, wv, bv, av, bv_lo, lora_alpha)

    assert jnp.allclose(q, q_ref, atol=1e-3, rtol=1e-3), \
        f"query mismatch: {jnp.max(jnp.abs(q - q_ref))}"
    assert jnp.allclose(v, v_ref, atol=1e-3, rtol=1e-3), \
        f"value mismatch: {jnp.max(jnp.abs(v - v_ref))}"

    print("KERNEL_OK")
</pallas_src>

<mosaic_0001>
module attributes {stable_mosaic.version = 11 : i64} {
  func.func @_lora_linear_kernel(%arg0: i32, %arg1: i32, %arg2: i32, %arg3: memref<128x128xf32, #tpu.memory_space<vmem>>, %arg4: memref<128x128xf32, #tpu.memory_space<vmem>>, %arg5: memref<128x128xf32, #tpu.memory_space<vmem>>, %arg6: memref<128x128xf32, #tpu.memory_space<vmem>>, %arg7: memref<1x128xf32, #tpu.memory_space<vmem>>, %arg8: memref<128x128xf32, #tpu.memory_space<vmem>>, %arg9: memref<128x128xf32, #tpu.memory_space<vmem>>) attributes {dimension_semantics = [#tpu.dimension_semantics<parallel>, #tpu.dimension_semantics<parallel>, #tpu.dimension_semantics<arbitrary>], iteration_bounds = array<i64: 1, 1, 1>, scalar_prefetch = 0 : i64, scratch_operands = 1 : i64, tpu.core_type = #tpu.core_type<tc>, window_params = [{transform_indices = @transform_0, window_bounds = array<i64: 128, 128>}, {transform_indices = @transform_1, window_bounds = array<i64: 128, 128>}, {transform_indices = @transform_2, window_bounds = array<i64: 128, 128>}, {transform_indices = @transform_3, window_bounds = array<i64: 128, 128>}, {transform_indices = @transform_4, window_bounds = array<i64: 1, 128>}, {transform_indices = @transform_5, window_bounds = array<i64: 128, 128>}]} {
    %c0_i32 = arith.constant 0 : i32
    %0 = arith.cmpi eq, %arg2, %c0_i32 : i32
    %1 = arith.extui %0 : i1 to i32
    %c0_i32_0 = arith.constant 0 : i32
    %2 = arith.cmpi ne, %1, %c0_i32_0 : i32
    scf.if %2 {
      %cst_10 = arith.constant 0.000000e+00 : f32
      %12 = vector.broadcast %cst_10 : f32 to vector<128x128xf32>
      %c0_11 = arith.constant 0 : index
      %c0_12 = arith.constant 0 : index
      %13 = vector.load %arg9[%c0_11, %c0_12] : memref<128x128xf32, #tpu.memory_space<vmem>>, vector<128x128xf32>
      tpu.vector_store %arg9[%c0_11, %c0_12], %12 {strides = array<i32>} : memref<128x128xf32, #tpu.memory_space<vmem>>, vector<128x128xf32>,
    } else {
    }
    %c0 = arith.constant 0 : index
    %c0_1 = arith.constant 0 : index
    %3 = vector.load %arg9[%c0, %c0_1] : memref<128x128xf32, #tpu.memory_space<vmem>>, vector<128x128xf32>
    %c0_2 = arith.constant 0 : index
    %c0_3 = arith.constant 0 : index
    %4 = vector.load %arg3[%c0_2, %c0_3] : memref<128x128xf32, #tpu.memory_space<vmem>>, vector<128x128xf32>
    %c0_4 = arith.constant 0 : index
    %c0_5 = arith.constant 0 : index
    %5 = vector.load %arg4[%c0_4, %c0_5] : memref<128x128xf32, #tpu.memory_space<vmem>>, vector<128x128xf32>
    %cst = arith.constant dense<0.000000e+00> : vector<128x128xf32>
    %6 = tpu.matmul %4, %5, %cst {dimension_numbers = #tpu.dot_dimension_numbers<[1], [1], [0], [0], [0, 0, 1, 0], [], []>} : vector<128x128xf32>, vector<128x128xf32>, vector<128x128xf32> -> vector<128x128xf32>
    %7 = arith.addf %3, %6 : vector<128x128xf32>
    %c0_6 = arith.constant 0 : index
    %c0_7 = arith.constant 0 : index
    %8 = vector.load %arg9[%c0_6, %c0_7] : memref<128x128xf32, #tpu.memory_space<vmem>>, vector<128x128xf32>
    tpu.vector_store %arg9[%c0_6, %c0_7], %7 {strides = array<i32>} : memref<128x128xf32, #tpu.memory_space<vmem>>, vector<128x128xf32>,
    %c0_i32_8 = arith.constant 0 : i32
    %9 = arith.cmpi eq, %arg2, %c0_i32_8 : i32
    %10 = arith.extui %9 : i1 to i32
    %c0_i32_9 = arith.constant 0 : i32
    %11 = arith.cmpi ne, %10, %c0_i32_9 : i32
    scf.if %11 {
      %c0_10 = arith.constant 0 : index
      %c0_11 = arith.constant 0 : index
      %12 = vector.load %arg5[%c0_10, %c0_11] : memref<128x128xf32, #tpu.memory_space<vmem>>, vector<128x128xf32>
      %c0_12 = arith.constant 0 : index
      %c0_13 = arith.constant 0 : index
      %13 = vector.load %arg6[%c0_12, %c0_13] : memref<128x128xf32, #tpu.memory_space<vmem>>, vector<128x128xf32>
      %cst_14 = arith.constant dense<0.000000e+00> : vector<128x128xf32>
      %14 = tpu.matmul %12, %13, %cst_14 {dimension_numbers = #tpu.dot_dimension_numbers<[1], [1], [0], [0], [0, 0, 1, 0], [], []>} : vector<128x128xf32>, vector<128x128xf32>, vector<128x128xf32> -> vector<128x128xf32>
      %c0_15 = arith.constant 0 : index
      %c0_16 = arith.constant 0 : index
      %15 = vector.load %arg9[%c0_15, %c0_16] : memref<128x128xf32, #tpu.memory_space<vmem>>, vector<128x128xf32>
      %16 = arith.addf %15, %14 : vector<128x128xf32>
      %c0_17 = arith.constant 0 : index
      %c0_18 = arith.constant 0 : index
      %17 = vector.load %arg7[%c0_17, %c0_18] : memref<1x128xf32, #tpu.memory_space<vmem>>, vector<1x128xf32>
      %18 = vector.broadcast %17 : vector<1x128xf32> to vector<128x128xf32>
      %19 = arith.addf %16, %18 : vector<128x128xf32>
      %c0_19 = arith.constant 0 : index
      %c0_20 = arith.constant 0 : index
      %20 = vector.load %arg8[%c0_19, %c0_20] : memref<128x128xf32, #tpu.memory_space<vmem>>, vector<128x128xf32>
      tpu.vector_store %arg8[%c0_19, %c0_20], %19 {strides = array<i32>} : memref<128x128xf32, #tpu.memory_space<vmem>>, vector<128x128xf32>,
    } else {
    }
    return
  }
  func.func @transform_0(%arg0: i32, %arg1: i32, %arg2: i32) -> (i32, i32) {
    %c0_i32 = arith.constant 0 : i32
    return %arg0, %arg2 : i32, i32
  }
  func.func @transform_1(%arg0: i32, %arg1: i32, %arg2: i32) -> (i32, i32) {
    %c0_i32 = arith.constant 0 : i32
    return %arg1, %arg2 : i32, i32
  }
  func.func @transform_2(%arg0: i32, %arg1: i32, %arg2: i32) -> (i32, i32) {
    %c0_i32 = arith.constant 0 : i32
    %c0_i32_0 = arith.constant 0 : i32
    return %arg0, %c0_i32 : i32, i32
  }
  func.func @transform_3(%arg0: i32, %arg1: i32, %arg2: i32) -> (i32, i32) {
    %c0_i32 = arith.constant 0 : i32
    %c0_i32_0 = arith.constant 0 : i32
    return %arg1, %c0_i32 : i32, i32
  }
  func.func @transform_4(%arg0: i32, %arg1: i32, %arg2: i32) -> (i32, i32) {
    %c0_i32 = arith.constant 0 : i32
    %c0_i32_0 = arith.constant 0 : i32
    return %c0_i32, %arg1 : i32, i32
  }
  func.func @transform_5(%arg0: i32, %arg1: i32, %arg2: i32) -> (i32, i32) {
    %c0_i32 = arith.constant 0 : i32
    return %arg0, %arg1 : i32, i32
  }
}

</mosaic_0001>

<llo_original>
// kernel: _lora_linear_impl.1
$region0: #{_lora_linear_impl.1}
  #allocation0 [shape = 'u32[]', space=smem, size = 0x4, offset = 0x4, fixed_abs, tag = 'smem constant byte address 0x4 - core index']
  #allocation1 [shape = 'u32[144,128]{1,0:T(1,128)}', space=vmem, size = 0x12000, scoped, tag = 'internal scratch']
  #allocation2 [shape = 'f32[128,128]{1,0:T(8,128)}', space=vmem, size = 0x10000, scoped, tag = 'scratch operand']
  %s0 = inlined_call_operand.vmem [shape: f32[128,128], index: 0, kind: input, shape index: {}]
  %s1 = inlined_call_operand.vmem [shape: f32[128,128], index: 1, kind: input, shape index: {}]
  %s2 = inlined_call_operand.vmem [shape: f32[128,128], index: 2, kind: input, shape index: {}]
  %s3 = inlined_call_operand.vmem [shape: f32[128,128], index: 3, kind: input, shape index: {}]
  %s4 = inlined_call_operand.vmem [shape: f32[1,128], index: 4, kind: input, shape index: {}]
  %s5 = inlined_call_operand.hbm [shape: f32[128,128], index: 5, kind: output, shape index: {}]
  %s6 = sld [smem:[#allocation0]]
  $region38: #{_lora_linear_impl.1} parent=0
    _
  %s8 = ssub.s32 1, %s6
  %s9 = scalar_select 0, %s8, %s6
  $region1: #{_lora_linear_impl.1} parent=0
    #allocation3 [shape = 'u8[65536]{0}', space=vmem, size = 0x10000, scoped, tag = 'output window, operand 0, single buffered']
    #allocation4 [shape = 's32[1]{0}', space=sflag, size = 0x4, scoped, tag = 'scoped memory for _lora_linear_impl.1']
    %10 = vsyncpa [#allocation4], 0
    // Predicated region
    $region2: #{_lora_linear_impl.1} parent=1 // pred_check
      _
    $region3: #{_lora_linear_impl.1} parent=1 // pred_check_branch
      %12 = sbr.rel (0) target = $region5
    $region4: #{_lora_linear_impl.1} parent=1 // pred_region
      _
    $region5: #{_lora_linear_impl.1} parent=1 // pred_fallthru
      _
    // Predicated region
    $region6: #{_lora_linear_impl.1} parent=1 // pred_check
      _
    $region7: #{_lora_linear_impl.1} parent=1 // pred_check_branch
      %14 = sbr.rel (0) target = $region9
    $region8: #{_lora_linear_impl.1} parent=1 // pred_region
      _
    $region9: #{_lora_linear_impl.1} parent=1 // pred_fallthru
      _
    // Predicated region
    $region10: #{_lora_linear_impl.1} parent=1 // pred_check
      _
    $region11: #{_lora_linear_impl.1} parent=1 // pred_check_branch
      %16 = sbr.rel (0) target = $region13
    $region12: #{_lora_linear_impl.1} parent=1 // pred_region
      _
    $region13: #{_lora_linear_impl.1} parent=1 // pred_fallthru
      _
    // Predicated region
    $region14: #{_lora_linear_impl.1} parent=1 // pred_check
      _
    $region15: #{_lora_linear_impl.1} parent=1 // pred_check_branch
      %18 = sbr.rel (0) target = $region17
    $region16: #{_lora_linear_impl.1} parent=1 // pred_region
      _
    $region17: #{_lora_linear_impl.1} parent=1 // pred_fallthru
      _
    // Predicated region
    $region18: #{_lora_linear_impl.1} parent=1 // pred_check
      _
    $region19: #{_lora_linear_impl.1} parent=1 // pred_check_branch
      %20 = sbr.rel (0) target = $region21
    $region20: #{_lora_linear_impl.1} parent=1 // pred_region
      _
    $region21: #{_lora_linear_impl.1} parent=1 // pred_fallthru
      _
    %p21 = scmp.eq.s32.totalorder 0, 0
    // Predicated region
    $region22: #{_lora_linear_impl.1} parent=1 // pred_check
      %p22 = pneg %p21
    $region23: #{_lora_linear_impl.1} parent=1 // pred_check_branch
      %24 = sbr.rel (%p22) target = $region25
    $region24: #{_lora_linear_impl.1} parent=1 // pred_region
      %25 = vst [vmem:[#allocation2] sm:$0xff] 0.0
      %26 = vst [vmem:[#allocation2 + $0x8] sm:$0xff] 0.0
      %27 = vst [vmem:[#allocation2 + $0x10] sm:$0xff] 0.0
      %28 = vst [vmem:[#allocation2 + $0x18] sm:$0xff] 0.0
      %29 = vst [vmem:[#allocation2 + $0x20] sm:$0xff] 0.0
      %30 = vst [vmem:[#allocation2 + $0x28] sm:$0xff] 0.0
      %31 = vst [vmem:[#allocation2 + $0x30] sm:$0xff] 0.0
      %32 = vst [vmem:[#allocation2 + $0x38] sm:$0xff] 0.0
      %33 = vst [vmem:[#allocation2 + $0x40] sm:$0xff] 0.0
      %34 = vst [vmem:[#allocation2 + $0x48] sm:$0xff] 0.0
      %35 = vst [vmem:[#allocation2 + $0x50] sm:$0xff] 0.0
      %36 = vst [vmem:[#allocation2 + $0x58] sm:$0xff] 0.0
      %37 = vst [vmem:[#allocation2 + $0x60] sm:$0xff] 0.0
      %38 = vst [vmem:[#allocation2 + $0x68] sm:$0xff] 0.0
      %39 = vst [vmem:[#allocation2 + $0x70] sm:$0xff] 0.0
      %40 = vst [vmem:[#allocation2 + $0x78] sm:$0xff] 0.0
    $region25: #{_lora_linear_impl.1} parent=1 // pred_fallthru
      _
    %v41 = vld [vmem:[#allocation2] sm:$0xff]
    %v42 = vld [vmem:[#allocation2 + $0x8] sm:$0xff]
    %v43 = vld [vmem:[#allocation2 + $0x10] sm:$0xff]
    %v44 = vld [vmem:[#allocation2 + $0x18] sm:$0xff]
    %v45 = vld [vmem:[#allocation2 + $0x20] sm:$0xff]
    %v46 = vld [vmem:[#allocation2 + $0x28] sm:$0xff]
    %v47 = vld [vmem:[#allocation2 + $0x30] sm:$0xff]
    %v48 = vld [vmem:[#allocation2 + $0x38] sm:$0xff]
    %v49 = vld [vmem:[#allocation2 + $0x40] sm:$0xff]
    %v50 = vld [vmem:[#allocation2 + $0x48] sm:$0xff]
    %v51 = vld [vmem:[#allocation2 + $0x50] sm:$0xff]
    %v52 = vld [vmem:[#allocation2 + $0x58] sm:$0xff]
    %v53 = vld [vmem:[#allocation2 + $0x60] sm:$0xff]
    %v54 = vld [vmem:[#allocation2 + $0x68] sm:$0xff]
    %v55 = vld [vmem:[#allocation2 + $0x70] sm:$0xff]
    %v56 = vld [vmem:[#allocation2 + $0x78] sm:$0xff]
    %v57 = vld [vmem:[%s0] sm:$0xff]
    %v58 = vld [vmem:[%s0 + $0x8] sm:$0xff]
    %v59 = vld [vmem:[%s0 + $0x10] sm:$0xff]
    %v60 = vld [vmem:[%s0 + $0x18] sm:$0xff]
    %v61 = vld [vmem:[%s0 + $0x20] sm:$0xff]
    %v62 = vld [vmem:[%s0 + $0x28] sm:$0xff]
    %v63 = vld [vmem:[%s0 + $0x30] sm:$0xff]
    %v64 = vld [vmem:[%s0 + $0x38] sm:$0xff]
    %v65 = vld [vmem:[%s0 + $0x40] sm:$0xff]
    %v66 = vld [vmem:[%s0 + $0x48] sm:$0xff]
    %v67 = vld [vmem:[%s0 + $0x50] sm:$0xff]
    %v68 = vld [vmem:[%s0 + $0x58] sm:$0xff]
    %v69 = vld [vmem:[%s0 + $0x60] sm:$0xff]
    %v70 = vld [vmem:[%s0 + $0x68] sm:$0xff]
    %v71 = vld [vmem:[%s0 + $0x70] sm:$0xff]
    %v72 = vld [vmem:[%s0 + $0x78] sm:$0xff]
    %v73 = vld [vmem:[%s1] sm:$0xff]
    %v74 = vld [vmem:[%s1 + $0x8] sm:$0xff]
    %v75 = vld [vmem:[%s1 + $0x10] sm:$0xff]
    %v76 = vld [vmem:[%s1 + $0x18] sm:$0xff]
    %v77 = vld [vmem:[%s1 + $0x20] sm:$0xff]
    %v78 = vld [vmem:[%s1 + $0x28] sm:$0xff]
    %v79 = vld [vmem:[%s1 + $0x30] sm:$0xff]
    %v80 = vld [vmem:[%s1 + $0x38] sm:$0xff]
    %v81 = vld [vmem:[%s1 + $0x40] sm:$0xff]
    %v82 = vld [vmem:[%s1 + $0x48] sm:$0xff]
    %v83 = vld [vmem:[%s1 + $0x50] sm:$0xff]
    %v84 = vld [vmem:[%s1 + $0x58] sm:$0xff]
    %v85 = vld [vmem:[%s1 + $0x60] sm:$0xff]
    %v86 = vld [vmem:[%s1 + $0x68] sm:$0xff]
    %v87 = vld [vmem:[%s1 + $0x70] sm:$0xff]
    %v88 = vld [vmem:[%s1 + $0x78] sm:$0xff]
    %89 = vmatprep.subr.mxu0 0.0
    %90 = vmatpush1.xpose.msra.mxu0 %v73
    %91 = vmatprep.subr.mxu0 0.0
    %92 = vmatpush1.xpose.msra.mxu0 %v74
    %93 = vmatprep.subr.mxu0 0.0
    %94 = vmatpush1.xpose.msra.mxu0 %v75
    %95 = vmatprep.subr.mxu0 0.0
    %96 = vmatpush1.xpose.msra.mxu0 %v76
    %97 = vmatprep.subr.mxu0 0.0
    %98 = vmatpush1.xpose.msra.mxu0 %v77
    %99 = vmatprep.subr.mxu0 0.0
    %100 = vmatpush1.xpose.msra.mxu0 %v78
    %101 = vmatprep.subr.mxu0 0.0
    %102 = vmatpush1.xpose.msra.mxu0 %v79
    %103 = vmatprep.subr.mxu0 0.0
    %104 = vmatpush1.xpose.msra.mxu0 %v80
    %105 = vmatprep.subr.mxu0 0.0
    %106 = vmatpush1.xpose.msra.mxu0 %v81
    %107 = vmatprep.subr.mxu0 0.0
    %108 = vmatpush1.xpose.msra.mxu0 %v82
    %109 = vmatprep.subr.mxu0 0.0
    %110 = vmatpush1.xpose.msra.mxu0 %v83
    %111 = vmatprep.subr.mxu0 0.0
    %112 = vmatpush1.xpose.msra.mxu0 %v84
    %113 = vmatprep.subr.mxu0 0.0
    %114 = vmatpush1.xpose.msra.mxu0 %v85
    %115 = vmatprep.subr.mxu0 0.0
    %116 = vmatpush1.xpose.msra.mxu0 %v86
    %117 = vmatprep.subr.mxu0 0.0
    %118 = vmatpush1.xpose.msra.mxu0 %v87
    %119 = vmatprep.subr.mxu0 0.0
    %120 = vmatpush1.xpose.msra.mxu0 %v88
    %121 = vmatprep.subr.mxu0 0.0
    %122 = vmatpush1.xpose.msra.mxu0 0.0
    %123 = vmatprep.subr.mxu0 0.0
    %124 = vmatpush1.xpose.msra.mxu0 0.0
    %125 = vmatprep.subr.mxu0 0.0
    %126 = vmatpush1.xpose.msra.mxu0 0.0
    %127 = vmatprep.subr.mxu0 0.0
    %128 = vmatpush1.xpose.msra.mxu0 0.0
    %129 = vmatprep.subr.mxu0 0.0
    %130 = vmatpush1.xpose.msra.mxu0 0.0
    %131 = vmatprep.subr.mxu0 0.0
    %132 = vmatpush1.xpose.msra.mxu0 0.0
    %133 = vmatprep.subr.mxu0 0.0
    %134 = vmatpush1.xpose.msra.mxu0 0.0
    %135 = vmatprep.subr.mxu0 0.0
    %136 = vmatpush1.xpose.msra.mxu0 0.0
    %137 = vmatprep.subr.mxu0 0.0
    %138 = vmatpush1.xpose.msra.mxu0 0.0
    %139 = vmatprep.subr.mxu0 0.0
    %140 = vmatpush1.xpose.msra.mxu0 0.0
    %141 = vmatprep.subr.mxu0 0.0
    %142 = vmatpush1.xpose.msra.mxu0 0.0
    %143 = vmatprep.subr.mxu0 0.0
    %144 = vmatpush1.xpose.msra.mxu0 0.0
    %145 = vmatprep.subr.mxu0 0.0
    %146 = vmatpush1.xpose.msra.mxu0 0.0
    %147 = vmatprep.subr.mxu0 0.0
    %148 = vmatpush1.xpose.msra.mxu0 0.0
    %149 = vmatprep.subr.mxu0 0.0
    %150 = vmatpush1.xpose.msra.mxu0 0.0
    %151 = vmatprep.subr.mxu0 0.0
    %152 = vmatpush1.xpose.msra.mxu0 0.0
    %153 = vmatprep.mubr.f32.mxu0 0.0
    %154 = vmatmul.mubr.f32.gmra.mrb[0].mxu0 %v57
    %v155 = vpop.f32.mrb[0].mxu0
    %v156 = vadd.f32 0.0, %v155
    %v157 = vpop.f32.mrb[0].mxu0
    %158 = vmatprep.mubr.f32.mxu0 0.0
    %159 = vmatmul.mubr.f32.gmra.mrb[0].mxu0 %v58
    %v160 = vpop.f32.mrb[0].mxu0
    %v161 = vadd.f32 0.0, %v160
    %v162 = vpop.f32.mrb[0].mxu0
    %163 = vmatprep.mubr.f32.mxu0 0.0
    %164 = vmatmul.mubr.f32.gmra.mrb[0].mxu0 %v59
    %v165 = vpop.f32.mrb[0].mxu0
    %v166 = vadd.f32 0.0, %v165
    %v167 = vpop.f32.mrb[0].mxu0
    %168 = vmatprep.mubr.f32.mxu0 0.0
    %169 = vmatmul.mubr.f32.gmra.mrb[0].mxu0 %v60
    %v170 = vpop.f32.mrb[0].mxu0
    %v171 = vadd.f32 0.0, %v170
    %v172 = vpop.f32.mrb[0].mxu0
    %173 = vmatprep.mubr.f32.mxu0 0.0
    %174 = vmatmul.mubr.f32.gmra.mrb[0].mxu0 %v61
    %v175 = vpop.f32.mrb[0].mxu0
    %v176 = vadd.f32 0.0, %v175
    %v177 = vpop.f32.mrb[0].mxu0
    %178 = vmatprep.mubr.f32.mxu0 0.0
    %179 = vmatmul.mubr.f32.gmra.mrb[0].mxu0 %v62
    %v180 = vpop.f32.mrb[0].mxu0
    %v181 = vadd.f32 0.0, %v180
    %v182 = vpop.f32.mrb[0].mxu0
    %183 = vmatprep.mubr.f32.mxu0 0.0
    %184 = vmatmul.mubr.f32.gmra.mrb[0].mxu0 %v63
    %v185 = vpop.f32.mrb[0].mxu0
    %v186 = vadd.f32 0.0, %v185
    %v187 = vpop.f32.mrb[0].mxu0
    %188 = vmatprep.mubr.f32.mxu0 0.0
    %189 = vmatmul.mubr.f32.gmra.mrb[0].mxu0 %v64
    %v190 = vpop.f32.mrb[0].mxu0
    %v191 = vadd.f32 0.0, %v190
    %v192 = vpop.f32.mrb[0].mxu0
    %193 = vmatprep.mubr.f32.mxu0 0.0
    %194 = vmatmul.mubr.f32.gmra.mrb[0].mxu0 %v65
    %v195 = vpop.f32.mrb[0].mxu0
    %v196 = vadd.f32 0.0, %v195
    %v197 = vpop.f32.mrb[0].mxu0
    %198 = vmatprep.mubr.f32.mxu0 0.0
    %199 = vmatmul.mubr.f32.gmra.mrb[0].mxu0 %v66
    %v200 = vpop.f32.mrb[0].mxu0
    %v201 = vadd.f32 0.0, %v200
    %v202 = vpop.f32.mrb[0].mxu0
    %203 = vmatprep.mubr.f32.mxu0 0.0
    %204 = vmatmul.mubr.f32.gmra.mrb[0].mxu0 %v67
    %v205 = vpop.f32.mrb[0].mxu0
    %v206 = vadd.f32 0.0, %v205
    %v207 = vpop.f32.mrb[0].mxu0
    %208 = vmatprep.mubr.f32.mxu0 0.0
    %209 = vmatmul.mubr.f32.gmra.mrb[0].mxu0 %v68
    %v210 = vpop.f32.mrb[0].mxu0
    %v211 = vadd.f32 0.0, %v210
    %v212 = vpop.f32.mrb[0].mxu0
    %213 = vmatprep.mubr.f32.mxu0 0.0
    %214 = vmatmul.mubr.f32.gmra.mrb[0].mxu0 %v69
    %v215 = vpop.f32.mrb[0].mxu0
    %v216 = vadd.f32 0.0, %v215
    %v217 = vpop.f32.mrb[0].mxu0
    %218 = vmatprep.mubr.f32.mxu0 0.0
    %219 = vmatmul.mubr.f32.gmra.mrb[0].mxu0 %v70
    %v220 = vpop.f32.mrb[0].mxu0
    %v221 = vadd.f32 0.0, %v220
    %v222 = vpop.f32.mrb[0].mxu0
    %223 = vmatprep.mubr.f32.mxu0 0.0
    %224 = vmatmul.mubr.f32.gmra.mrb[0].mxu0 %v71
    %v225 = vpop.f32.mrb[0].mxu0
    %v226 = vadd.f32 0.0, %v225
    %v227 = vpop.f32.mrb[0].mxu0
    %228 = vmatprep.mubr.f32.mxu0 0.0
    %229 = vmatmul.mubr.f32.gmra.mrb[0].mxu0 %v72
    %v230 = vpop.f32.mrb[0].mxu0
    %v231 = vadd.f32 0.0, %v230
    %v232 = vpop.f32.mrb[0].mxu0
    %233 = vdwg.mxu0
    %v234 = vadd.f32 %v41, %v156
    %v235 = vadd.f32 %v42, %v161
    %v236 = vadd.f32 %v43, %v166
    %v237 = vadd.f32 %v44, %v171
    %v238 = vadd.f32 %v45, %v176
    %v239 = vadd.f32 %v46, %v181
    %v240 = vadd.f32 %v47, %v186
    %v241 = vadd.f32 %v48, %v191
    %v242 = vadd.f32 %v49, %v196
    %v243 = vadd.f32 %v50, %v201
    %v244 = vadd.f32 %v51, %v206
    %v245 = vadd.f32 %v52, %v211
    %v246 = vadd.f32 %v53, %v216
    %v247 = vadd.f32 %v54, %v221
    %v248 = vadd.f32 %v55, %v226
    %v249 = vadd.f32 %v56, %v231
    %250 = vst [vmem:[#allocation2] sm:$0xff] %v234
    %251 = vst [vmem:[#allocation2 + $0x8] sm:$0xff] %v235
    %252 = vst [vmem:[#allocation2 + $0x10] sm:$0xff] %v236
    %253 = vst [vmem:[#allocation2 + $0x18] sm:$0xff] %v237
    %254 = vst [vmem:[#allocation2 + $0x20] sm:$0xff] %v238
    %255 = vst [vmem:[#allocation2 + $0x28] sm:$0xff] %v239
    %256 = vst [vmem:[#allocation2 + $0x30] sm:$0xff] %v240
    %257 = vst [vmem:[#allocation2 + $0x38] sm:$0xff] %v241
    %258 = vst [vmem:[#allocation2 + $0x40] sm:$0xff] %v242
    %259 = vst [vmem:[#allocation2 + $0x48] sm:$0xff] %v243
    %260 = vst [vmem:[#allocation2 + $0x50] sm:$0xff] %v244
    %261 = vst [vmem:[#allocation2 + $0x58] sm:$0xff] %v245
    %262 = vst [vmem:[#allocation2 + $0x60] sm:$0xff] %v246
    %263 = vst [vmem:[#allocation2 + $0x68] sm:$0xff] %v247
    %264 = vst [vmem:[#allocation2 + $0x70] sm:$0xff] %v248
    %265 = vst [vmem:[#allocation2 + $0x78] sm:$0xff] %v249
    // Predicated region
    $region26: #{_lora_linear_impl.1} parent=1 // pred_check
      %p266 = pneg %p21
    $region27: #{_lora_linear_impl.1} parent=1 // pred_check_branch
      %268 = sbr.rel (%p266) target = $region29
    $region28: #{_lora_linear_impl.1} parent=1 // pred_region
      %v269 = vld [vmem:[%s2] sm:$0xff]
      %v270 = vld [vmem:[%s2 + $0x8] sm:$0xff]
      %v271 = vld [vmem:[%s2 + $0x10] sm:$0xff]
      %v272 = vld [vmem:[%s2 + $0x18] sm:$0xff]
      %v273 = vld [vmem:[%s2 + $0x20] sm:$0xff]
      %v274 = vld [vmem:[%s2 + $0x28] sm:$0xff]
      %v275 = vld [vmem:[%s2 + $0x30] sm:$0xff]
      %v276 = vld [vmem:[%s2 + $0x38] sm:$0xff]
      %v277 = vld [vmem:[%s2 + $0x40] sm:$0xff]
      %v278 = vld [vmem:[%s2 + $0x48] sm:$0xff]
      %v279 = vld [vmem:[%s2 + $0x50] sm:$0xff]
      %v280 = vld [vmem:[%s2 + $0x58] sm:$0xff]
      %v281 = vld [vmem:[%s2 + $0x60] sm:$0xff]
      %v282 = vld [vmem:[%s2 + $0x68] sm:$0xff]
      %v283 = vld [vmem:[%s2 + $0x70] sm:$0xff]
      %v284 = vld [vmem:[%s2 + $0x78] sm:$0xff]
      %v285 = vld [vmem:[%s3] sm:$0xff]
      %v286 = vld [vmem:[%s3 + $0x8] sm:$0xff]
      %v287 = vld [vmem:[%s3 + $0x10] sm:$0xff]
      %v288 = vld [vmem:[%s3 + $0x18] sm:$0xff]
      %v289 = vld [vmem:[%s3 + $0x20] sm:$0xff]
      %v290 = vld [vmem:[%s3 + $0x28] sm:$0xff]
      %v291 = vld [vmem:[%s3 + $0x30] sm:$0xff]
      %v292 = vld [vmem:[%s3 + $0x38] sm:$0xff]
      %v293 = vld [vmem:[%s3 + $0x40] sm:$0xff]
      %v294 = vld [vmem:[%s3 + $0x48] sm:$0xff]
      %v295 = vld [vmem:[%s3 + $0x50] sm:$0xff]
      %v296 = vld [vmem:[%s3 + $0x58] sm:$0xff]
      %v297 = vld [vmem:[%s3 + $0x60] sm:$0xff]
      %v298 = vld [vmem:[%s3 + $0x68] sm:$0xff]
      %v299 = vld [vmem:[%s3 + $0x70] sm:$0xff]
      %v300 = vld [vmem:[%s3 + $0x78] sm:$0xff]
      %301 = vmatprep.subr.mxu0 0.0
      %302 = vmatpush1.xpose.msra.mxu0 %v285
      %303 = vmatprep.subr.mxu0 0.0
      %304 = vmatpush1.xpose.msra.mxu0 %v286
      %305 = vmatprep.subr.mxu0 0.0
      %306 = vmatpush1.xpose.msra.mxu0 %v287
      %307 = vmatprep.subr.mxu0 0.0
      %308 = vmatpush1.xpose.msra.mxu0 %v288
      %309 = vmatprep.subr.mxu0 0.0
      %310 = vmatpush1.xpose.msra.mxu0 %v289
      %311 = vmatprep.subr.mxu0 0.0
      %312 = vmatpush1.xpose.msra.mxu0 %v290
      %313 = vmatprep.subr.mxu0 0.0
      %314 = vmatpush1.xpose.msra.mxu0 %v291
      %315 = vmatprep.subr.mxu0 0.0
      %316 = vmatpush1.xpose.msra.mxu0 %v292
      %317 = vmatprep.subr.mxu0 0.0
      %318 = vmatpush1.xpose.msra.mxu0 %v293
      %319 = vmatprep.subr.mxu0 0.0
      %320 = vmatpush1.xpose.msra.mxu0 %v294
      %321 = vmatprep.subr.mxu0 0.0
      %322 = vmatpush1.xpose.msra.mxu0 %v295
      %323 = vmatprep.subr.mxu0 0.0
      %324 = vmatpush1.xpose.msra.mxu0 %v296
      %325 = vmatprep.subr.mxu0 0.0
      %326 = vmatpush1.xpose.msra.mxu0 %v297
      %327 = vmatprep.subr.mxu0 0.0
      %328 = vmatpush1.xpose.msra.mxu0 %v298
      %329 = vmatprep.subr.mxu0 0.0
      %330 = vmatpush1.xpose.msra.mxu0 %v299
      %331 = vmatprep.subr.mxu0 0.0
      %332 = vmatpush1.xpose.msra.mxu0 %v300
      %333 = vmatprep.subr.mxu0 0.0
      %334 = vmatpush1.xpose.msra.mxu0 0.0
      %335 = vmatprep.subr.mxu0 0.0
      %336 = vmatpush1.xpose.msra.mxu0 0.0
      %337 = vmatprep.subr.mxu0 0.0
      %338 = vmatpush1.xpose.msra.mxu0 0.0
      %339 = vmatprep.subr.mxu0 0.0
      %340 = vmatpush1.xpose.msra.mxu0 0.0
      %341 = vmatprep.subr.mxu0 0.0
      %342 = vmatpush1.xpose.msra.mxu0 0.0
      %343 = vmatprep.subr.mxu0 0.0
      %344 = vmatpush1.xpose.msra.mxu0 0.0
      %345 = vmatprep.subr.mxu0 0.0
      %346 = vmatpush1.xpose.msra.mxu0 0.0
      %347 = vmatprep.subr.mxu0 0.0
      %348 = vmatpush1.xpose.msra.mxu0 0.0
      %349 = vmatprep.subr.mxu0 0.0
      %350 = vmatpush1.xpose.msra.mxu0 0.0
      %351 = vmatprep.subr.mxu0 0.0
      %352 = vmatpush1.xpose.msra.mxu0 0.0
      %353 = vmatprep.subr.mxu0 0.0
      %354 = vmatpush1.xpose.msra.mxu0 0.0
      %355 = vmatprep.subr.mxu0 0.0
      %356 = vmatpush1.xpose.msra.mxu0 0.0
      %357 = vmatprep.subr.mxu0 0.0
      %358 = vmatpush1.xpose.msra.mxu0 0.0
      %359 = vmatprep.subr.mxu0 0.0
      %360 = vmatpush1.xpose.msra.mxu0 0.0
      %361 = vmatprep.subr.mxu0 0.0
      %362 = vmatpush1.xpose.msra.mxu0 0.0
      %363 = vmatprep.subr.mxu0 0.0
      %364 = vmatpush1.xpose.msra.mxu0 0.0
      %365 = vmatprep.mubr.f32.mxu0 0.0
      %366 = vmatmul.mubr.f32.gmra.mrb[0].mxu0 %v269
      %v367 = vpop.f32.mrb[0].mxu0
      %v368 = vadd.f32 0.0, %v367
      %v369 = vpop.f32.mrb[0].mxu0
      %370 = vmatprep.mubr.f32.mxu0 0.0
      %371 = vmatmul.mubr.f32.gmra.mrb[0].mxu0 %v270
      %v372 = vpop.f32.mrb[0].mxu0
      %v373 = vadd.f32 0.0, %v372
      %v374 = vpop.f32.mrb[0].mxu0
      %375 = vmatprep.mubr.f32.mxu0 0.0
      %376 = vmatmul.mubr.f32.gmra.mrb[0].mxu0 %v271
      %v377 = vpop.f32.mrb[0].mxu0
      %v378 = vadd.f32 0.0, %v377
      %v379 = vpop.f32.mrb[0].mxu0
      %380 = vmatprep.mubr.f32.mxu0 0.0
      %381 = vmatmul.mubr.f32.gmra.mrb[0].mxu0 %v272
      %v382 = vpop.f32.mrb[0].mxu0
      %v383 = vadd.f32 0.0, %v382
      %v384 = vpop.f32.mrb[0].mxu0
      %385 = vmatprep.mubr.f32.mxu0 0.0
      %386 = vmatmul.mubr.f32.gmra.mrb[0].mxu0 %v273
      %v387 = vpop.f32.mrb[0].mxu0
      %v388 = vadd.f32 0.0, %v387
      %v389 = vpop.f32.mrb[0].mxu0
      %390 = vmatprep.mubr.f32.mxu0 0.0
      %391 = vmatmul.mubr.f32.gmra.mrb[0].mxu0 %v274
      %v392 = vpop.f32.mrb[0].mxu0
      %v393 = vadd.f32 0.0, %v392
      %v394 = vpop.f32.mrb[0].mxu0
      %395 = vmatprep.mubr.f32.mxu0 0.0
      %396 = vmatmul.mubr.f32.gmra.mrb[0].mxu0 %v275
      %v397 = vpop.f32.mrb[0].mxu0
      %v398 = vadd.f32 0.0, %v397
      %v399 = vpop.f32.mrb[0].mxu0
      %400 = vmatprep.mubr.f32.mxu0 0.0
      %401 = vmatmul.mubr.f32.gmra.mrb[0].mxu0 %v276
      %v402 = vpop.f32.mrb[0].mxu0
      %v403 = vadd.f32 0.0, %v402
      %v404 = vpop.f32.mrb[0].mxu0
      %405 = vmatprep.mubr.f32.mxu0 0.0
      %406 = vmatmul.mubr.f32.gmra.mrb[0].mxu0 %v277
      %v407 = vpop.f32.mrb[0].mxu0
      %v408 = vadd.f32 0.0, %v407
      %v409 = vpop.f32.mrb[0].mxu0
      %410 = vmatprep.mubr.f32.mxu0 0.0
      %411 = vmatmul.mubr.f32.gmra.mrb[0].mxu0 %v278
      %v412 = vpop.f32.mrb[0].mxu0
      %v413 = vadd.f32 0.0, %v412
      %v414 = vpop.f32.mrb[0].mxu0
      %415 = vmatprep.mubr.f32.mxu0 0.0
      %416 = vmatmul.mubr.f32.gmra.mrb[0].mxu0 %v279
      %v417 = vpop.f32.mrb[0].mxu0
      %v418 = vadd.f32 0.0, %v417
      %v419 = vpop.f32.mrb[0].mxu0
      %420 = vmatprep.mubr.f32.mxu0 0.0
      %421 = vmatmul.mubr.f32.gmra.mrb[0].mxu0 %v280
      %v422 = vpop.f32.mrb[0].mxu0
      %v423 = vadd.f32 0.0, %v422
      %v424 = vpop.f32.mrb[0].mxu0
      %425 = vmatprep.mubr.f32.mxu0 0.0
      %426 = vmatmul.mubr.f32.gmra.mrb[0].mxu0 %v281
      %v427 = vpop.f32.mrb[0].mxu0
      %v428 = vadd.f32 0.0, %v427
      %v429 = vpop.f32.mrb[0].mxu0
      %430 = vmatprep.mubr.f32.mxu0 0.0
      %431 = vmatmul.mubr.f32.gmra.mrb[0].mxu0 %v282
      %v432 = vpop.f32.mrb[0].mxu0
      %v433 = vadd.f32 0.0, %v432
      %v434 = vpop.f32.mrb[0].mxu0
      %435 = vmatprep.mubr.f32.mxu0 0.0
      %436 = vmatmul.mubr.f32.gmra.mrb[0].mxu0 %v283
      %v437 = vpop.f32.mrb[0].mxu0
      %v438 = vadd.f32 0.0, %v437
      %v439 = vpop.f32.mrb[0].mxu0
      %440 = vmatprep.mubr.f32.mxu0 0.0
      %441 = vmatmul.mubr.f32.gmra.mrb[0].mxu0 %v284
      %v442 = vpop.f32.mrb[0].mxu0
      %v443 = vadd.f32 0.0, %v442
      %v444 = vpop.f32.mrb[0].mxu0
      %445 = vdwg.mxu0
      %v446 = vld [vmem:[#allocation2] sm:$0xff]
      %v447 = vld [vmem:[#allocation2 + $0x8] sm:$0xff]
      %v448 = vld [vmem:[#allocation2 + $0x10] sm:$0xff]
      %v449 = vld [vmem:[#allocation2 + $0x18] sm:$0xff]
      %v450 = vld [vmem:[#allocation2 + $0x20] sm:$0xff]
      %v451 = vld [vmem:[#allocation2 + $0x28] sm:$0xff]
      %v452 = vld [vmem:[#allocation2 + $0x30] sm:$0xff]
      %v453 = vld [vmem:[#allocation2 + $0x38] sm:$0xff]
      %v454 = vld [vmem:[#allocation2 + $0x40] sm:$0xff]
      %v455 = vld [vmem:[#allocation2 + $0x48] sm:$0xff]
      %v456 = vld [vmem:[#allocation2 + $0x50] sm:$0xff]
      %v457 = vld [vmem:[#allocation2 + $0x58] sm:$0xff]
      %v458 = vld [vmem:[#allocation2 + $0x60] sm:$0xff]
      %v459 = vld [vmem:[#allocation2 + $0x68] sm:$0xff]
      %v460 = vld [vmem:[#allocation2 + $0x70] sm:$0xff]
      %v461 = vld [vmem:[#allocation2 + $0x78] sm:$0xff]
      %v462 = vadd.f32 %v446, %v368
      %v463 = vadd.f32 %v447, %v373
      %v464 = vadd.f32 %v448, %v378
      %v465 = vadd.f32 %v449, %v383
      %v466 = vadd.f32 %v450, %v388
      %v467 = vadd.f32 %v451, %v393
      %v468 = vadd.f32 %v452, %v398
      %v469 = vadd.f32 %v453, %v403
      %v470 = vadd.f32 %v454, %v408
      %v471 = vadd.f32 %v455, %v413
      %v472 = vadd.f32 %v456, %v418
      %v473 = vadd.f32 %v457, %v423
      %v474 = vadd.f32 %v458, %v428
      %v475 = vadd.f32 %v459, %v433
      %v476 = vadd.f32 %v460, %v438
      %v477 = vadd.f32 %v461, %v443
      %v478 = vld [vmem:[%s4] sm:$0x1]
      %v480 = vlaneseq
      %v481 = vshrl.u32 %v480, 7
      %v482 = vsub.s32 0, %v481
      %v483 = vrot.slane %v478, %v482
      %v485 = vadd.f32 %v462, %v483
      %v486 = vadd.f32 %v463, %v483
      %v487 = vadd.f32 %v464, %v483
      %v488 = vadd.f32 %v465, %v483
      %v489 = vadd.f32 %v466, %v483
      %v490 = vadd.f32 %v467, %v483
      %v491 = vadd.f32 %v468, %v483
      %v492 = vadd.f32 %v469, %v483
      %v493 = vadd.f32 %v470, %v483
      %v494 = vadd.f32 %v471, %v483
      %v495 = vadd.f32 %v472, %v483
      %v496 = vadd.f32 %v473, %v483
      %v497 = vadd.f32 %v474, %v483
      %v498 = vadd.f32 %v475, %v483
      %v499 = vadd.f32 %v476, %v483
      %v500 = vadd.f32 %v477, %v483
      %501 = vst [vmem:[#allocation3] sm:$0xff] %v485
      %502 = vst [vmem:[#allocation3 + $0x8] sm:$0xff] %v486
      %503 = vst [vmem:[#allocation3 + $0x10] sm:$0xff] %v487
      %504 = vst [vmem:[#allocation3 + $0x18] sm:$0xff] %v488
      %505 = vst [vmem:[#allocation3 + $0x20] sm:$0xff] %v489
      %506 = vst [vmem:[#allocation3 + $0x28] sm:$0xff] %v490
      %507 = vst [vmem:[#allocation3 + $0x30] sm:$0xff] %v491
      %508 = vst [vmem:[#allocation3 + $0x38] sm:$0xff] %v492
      %509 = vst [vmem:[#allocation3 + $0x40] sm:$0xff] %v493
      %510 = vst [vmem:[#allocation3 + $0x48] sm:$0xff] %v494
      %511 = vst [vmem:[#allocation3 + $0x50] sm:$0xff] %v495
      %512 = vst [vmem:[#allocation3 + $0x58] sm:$0xff] %v496
      %513 = vst [vmem:[#allocation3 + $0x60] sm:$0xff] %v497
      %514 = vst [vmem:[#allocation3 + $0x68] sm:$0xff] %v498
      %515 = vst [vmem:[#allocation3 + $0x70] sm:$0xff] %v499
      %516 = vst [vmem:[#allocation3 + $0x78] sm:$0xff] %v500
    $region29: #{_lora_linear_impl.1} parent=1 // pred_fallthru
      _
    // Predicated region
    $region30: #{_lora_linear_impl.1} parent=1 // pred_check
      _
    $region31: #{_lora_linear_impl.1} parent=1 // pred_check_branch
      %518 = sbr.rel (0) target = $region33
    $region32: #{_lora_linear_impl.1} parent=1 // pred_region
      %s520 = ssub.s32 2048, 2048
      %521 = vsyncadd [#allocation4], %s520
      %s522 = sshll.u32 [#allocation3], 4
      %s523 = int_to_ptr.vmem [resolvable:$true] %s522
      %528 = dma.vmem_to_hbm [thread:$0]  %s523, 2048, %s5, [#allocation4], 128, 128, 8
    $region33: #{_lora_linear_impl.1} parent=1 // pred_fallthru
      _
    // Predicated region
    $region34: #{_lora_linear_impl.1} parent=1 // pred_check
      _
    $region35: #{_lora_linear_impl.1} parent=1 // pred_check_branch
      %530 = sbr.rel (0) target = $region37
    $region36: #{_lora_linear_impl.1} parent=1 // pred_region
      %531 = dma.done [#allocation4], 2048
    $region37: #{_lora_linear_impl.1} parent=1 // pred_fallthru
      _
    %532 = vsyncpa [#allocation4], 1

</llo_original>
